<compile_context>
chip_gen: v7x
topology: tpu7x:2x2x1
jax: 0.10.0
libtpu: 0.0.40
codegen_flags: <defaults>
</compile_context>

<pallas_src>
import jax
import jax.numpy as jnp
from jax.experimental import pallas as pl
from jax.experimental.pallas import tpu as pltpu

LANE = 128
VMEM_LIMIT_BYTES = 48 * 1024 * 1024   # below v7x physical (64 MiB) -> headroom


def _round_up(x, m):
    return (x + m - 1) // m * m


def _pad_last(x, target):
    pad = target - x.shape[-1]
    if pad == 0:
        return x
    cfg = [(0, 0)] * (x.ndim - 1) + [(0, pad)]
    return jnp.pad(x, cfg)


def _pick_row_tile(n):
    """Largest of {1024, 512, 256, 128} dividing n, else the full extent."""
    for t in (1024, 512, 256, 128):
        if n >= t and n % t == 0:
            return t
    return n


# ---------------------------------------------------------------------------
# Kernel 1: pairwise "distance" matrix for knn (torch sign convention:
# pd = -||xi||^2 + 2*xi.xj - ||xj||^2, larger == closer).  f32 for stable
# neighbor ordering.  Tiled over output rows; the row operand arrives
# pre-transposed (row_tile, Cp8) so no in-kernel transpose is needed.
# ---------------------------------------------------------------------------
def _pairwise_dist_kernel(ptst_ref, pts_ref, out_ref):
    pr = ptst_ref[0]                                          # (TN, Cp8) rows
    pa = pts_ref[0]                                           # (Cp8, N) all points
    inner = jnp.dot(pr, pa, preferred_element_type=jnp.float32)   # (TN, N)
    xx_r = jnp.sum(pr * pr, axis=1, keepdims=True)            # (TN, 1)
    xx_a = jnp.sum(pa * pa, axis=0, keepdims=True)            # (1, N)
    out_ref[0] = 2.0 * inner - xx_r - xx_a


def pairwise_dist(points):
    """points: (B, Cp, N) f32 -> (B, N, N) negative squared distances."""
    B, Cp, N = points.shape
    cp8 = _round_up(Cp, 8)
    pts = jnp.pad(points, ((0, 0), (0, cp8 - Cp), (0, 0)))    # (B, Cp8, N)
    pts_t = jnp.transpose(pts, (0, 2, 1))                     # (B, N, Cp8)
    tn = _pick_row_tile(N)
    grid = (B, N // tn)
    return pl.pallas_call(
        _pairwise_dist_kernel,
        out_shape=jax.ShapeDtypeStruct((B, N, N), jnp.float32),
        grid=grid,
        in_specs=[
            pl.BlockSpec((1, tn, cp8), lambda b, r: (b, r, 0)),
            pl.BlockSpec((1, cp8, N), lambda b, r: (b, 0, 0)),
        ],
        out_specs=pl.BlockSpec((1, tn, N), lambda b, r: (b, r, 0)),
        compiler_params=pltpu.CompilerParams(
            dimension_semantics=("parallel", "parallel"),
            vmem_limit_bytes=VMEM_LIMIT_BYTES),
    )(pts_t, pts)


# ---------------------------------------------------------------------------
# Kernel 2: per-point projections, merged into ONE matmul:
#   feat @ [Wcd | Wd | Wsc] + [b1 | 0 | bsc]  ->  slice into pc / pd / sc.
#   Pc = feat @ (Wc - Wd) + b1   (f32, center half of layer 1, bias folded)
#   Pd = feat @ Wd               (bf16, gets gathered per neighbor)
#   sc = feat @ Wsc' + bsc       (f32, shortcut conv, BN folded)
# ---------------------------------------------------------------------------
def _make_project_kernel(c1_p, cout_p):
    def kernel(feat_ref, w_ref, b_ref, pc_ref, pd_ref, sc_ref):
        f = feat_ref[0]                                       # (TN, Cin_p) bf16
        res = jnp.dot(f, w_ref[...],
                      preferred_element_type=jnp.float32) + b_ref[...]
        pc_ref[0] = res[:, :c1_p]
        pd_ref[0] = res[:, c1_p:2 * c1_p].astype(jnp.bfloat16)
        sc_ref[0] = res[:, 2 * c1_p:2 * c1_p + cout_p]
    return kernel


def project(feat_p, proj_params, c1_p, cout_p, row_tile):
    B, N, cin_p = feat_p.shape
    w_all, b_all = proj_params
    grid = (B, N // row_tile)
    in_specs = [
        pl.BlockSpec((1, row_tile, cin_p), lambda b, r: (b, r, 0)),
        pl.BlockSpec(w_all.shape, lambda b, r: (0, 0)),
        pl.BlockSpec(b_all.shape, lambda b, r: (0, 0)),
    ]
    out_shape = (
        jax.ShapeDtypeStruct((B, N, c1_p), jnp.float32),
        jax.ShapeDtypeStruct((B, N, c1_p), jnp.bfloat16),
        jax.ShapeDtypeStruct((B, N, cout_p), jnp.float32),
    )
    out_specs = (
        pl.BlockSpec((1, row_tile, c1_p), lambda b, r: (b, r, 0)),
        pl.BlockSpec((1, row_tile, c1_p), lambda b, r: (b, r, 0)),
        pl.BlockSpec((1, row_tile, cout_p), lambda b, r: (b, r, 0)),
    )
    return pl.pallas_call(
        _make_project_kernel(c1_p, cout_p),
        out_shape=out_shape,
        grid=grid,
        in_specs=in_specs,
        out_specs=out_specs,
        compiler_params=pltpu.CompilerParams(
            dimension_semantics=("parallel", "parallel"),
            vmem_limit_bytes=VMEM_LIMIT_BYTES),
    )(feat_p, w_all, b_all)


# ---------------------------------------------------------------------------
# Kernel 3: remaining MLP layers + neighbor aggregation + residual + ReLU,
# tiled over (batch, row tiles, K).  One neighbor slab is processed per grid
# step and accumulated into the resident output block (1/K already folded
# into the last layer, so the accumulation is a plain sum).
# ---------------------------------------------------------------------------
def _make_edgeconv_kernel(num_tail_layers):
    def kernel(pc_ref, pd_ref, sc_ref, *rest):
        out_ref = rest[-1]
        prefs = rest[:-1]                                     # [w2, b2, w3, b3, ...]
        kk = pl.program_id(2)
        last_k = pl.num_programs(2) - 1

        # Layer-1 edge activation for this neighbor slab (decomposed form:
        # relu(x_i @ (Wc - Wd) + x_j @ Wd + b1)); cast is per-slab only.
        h = jnp.maximum(pc_ref[0] + pd_ref[0, 0].astype(jnp.float32), 0.0)

        if num_tail_layers == 0:
            contrib = h                       # 1/K already folded into layer 1
        else:
            x = h.astype(jnp.bfloat16)        # only bf16 persists between layers
            y = None
            for i in range(num_tail_layers):
                w = prefs[2 * i][...]         # bf16, BN scale (and 1/K) folded
                b = prefs[2 * i + 1][...]     # f32
                y = jnp.maximum(
                    jnp.dot(x, w, preferred_element_type=jnp.float32) + b, 0.0)
                if i < num_tail_layers - 1:
                    x = y.astype(jnp.bfloat16)
            contrib = y                       # (row_tile, Cout_p) f32

        @pl.when(kk == 0)
        def _():
            out_ref[0] = contrib

        @pl.when(kk > 0)
        def _():
            out_ref[0] = out_ref[0] + contrib

        @pl.when(kk == last_k)
        def _():
            out_ref[0] = jnp.maximum(out_ref[0] + sc_ref[0], 0.0)

    return kernel


def edgeconv_mlp(pc, pd_gathered, sc, tail_params, row_tile):
    """pc: (B,N,C1p) f32, pd_gathered: (B,K,N,C1p) bf16, sc: (B,N,Coutp) f32.
    Returns (B, N, Coutp) f32."""
    B, N, c1_p = pc.shape
    K = pd_gathered.shape[1]
    cout_p = sc.shape[-1]
    n_tiles = N // row_tile

    flat = []
    for w, b in tail_params:
        flat += [w, b]

    in_specs = [
        pl.BlockSpec((1, row_tile, c1_p), lambda b, r, kk: (b, r, 0)),
        pl.BlockSpec((1, 1, row_tile, c1_p), lambda b, r, kk: (b, kk, r, 0)),
        pl.BlockSpec((1, row_tile, cout_p), lambda b, r, kk: (b, r, 0)),
    ]
    for p in flat:
        in_specs.append(pl.BlockSpec(p.shape, lambda b, r, kk: (0, 0)))

    return pl.pallas_call(
        _make_edgeconv_kernel(len(tail_params)),
        out_shape=jax.ShapeDtypeStruct((B, N, cout_p), jnp.float32),
        grid=(B, n_tiles, K),
        in_specs=in_specs,
        out_specs=pl.BlockSpec((1, row_tile, cout_p), lambda b, r, kk: (b, r, 0)),
        compiler_params=pltpu.CompilerParams(
            dimension_semantics=("parallel", "parallel", "arbitrary"),
            vmem_limit_bytes=VMEM_LIMIT_BYTES),
    )(pc, pd_gathered, sc, *flat)


# ---------------------------------------------------------------------------
# Parameter folding / padding (glue, runs once).
# ---------------------------------------------------------------------------
def prepare_params(layer_params, sc_params, in_feat, k):
    num_layers = len(layer_params)

    # Fold BN scale into weight columns; fold 1/k (neighbor mean) into the LAST
    # layer (ReLU is positively homogeneous: mean_k relu(z_k) = sum_k relu(z_k/k)).
    folded = []
    for li, (w, s, b) in enumerate(layer_params):
        wf = w * s
        bf = b
        if li == num_layers - 1:
            wf = wf / k
            bf = bf / k
        folded.append((wf, bf))

    cin_p = _round_up(in_feat, LANE)
    c_pads = [_round_up(w.shape[1], LANE) for w, _ in folded]
    c1_p = c_pads[0]

    def pad_w(w, rp, cp):
        return jnp.zeros((rp, cp), jnp.float32).at[:w.shape[0], :w.shape[1]].set(w)

    def pad_b(b, cp):
        return jnp.zeros((1, cp), jnp.float32).at[:, :b.shape[1]].set(b)

    # First layer: split (2*Cin, C1) -> center / diff halves; decompose so the
    # concatenated edge tensor is never built.
    w1, b1 = folded[0]
    wc, wd = w1[:in_feat], w1[in_feat:]
    wcd_p = pad_w(wc - wd, cin_p, c1_p)
    wd_p = pad_w(wd, cin_p, c1_p)
    b1_p = pad_b(b1, c1_p)

    tail = []
    prev_p = c1_p
    for li in range(1, num_layers):
        w, b = folded[li]
        cp = c_pads[li]
        tail.append((pad_w(w, prev_p, cp).astype(jnp.bfloat16), pad_b(b, cp)))
        prev_p = cp

    # Shortcut 1x1 conv + folded BN.  (If in_feat == out_feats[-1] the torch
    # module uses an identity shortcut — map that to identity weights here.)
    wsc, ssc, bsc = sc_params
    cout = wsc.shape[1]
    cout_p = _round_up(cout, LANE)
    wsc_p = pad_w(wsc * ssc, cin_p, cout_p)
    bsc_p = pad_b(bsc, cout_p)

    # Merged projection: one MXU weight push / one wide matmul in the kernel.
    w_all = jnp.concatenate([wcd_p, wd_p, wsc_p], axis=1).astype(jnp.bfloat16)
    b_all = jnp.concatenate([b1_p, jnp.zeros((1, c1_p), jnp.float32), bsc_p],
                            axis=1)

    return (w_all, b_all), tail, c1_p, cout_p, cin_p, cout


# ---------------------------------------------------------------------------
# Top-level forward (torch layout in / out).
# ---------------------------------------------------------------------------
def edge_conv_block(points, features, k, layer_params, sc_params):
    """points: (B, Cp, N), features: (B, Cin, N)  ->  (B, Cout, N)."""
    B, Cp, N = points.shape
    Cin = features.shape[1]
    row_tile = _pick_row_tile(N)

    # kNN: distances in f32 (cancellation / tie stability).
    pd = pairwise_dist(points.astype(jnp.float32))             # (B, N, N)
    # TODO(synk): fuse a streaming top-k into the distance kernel (avoid the
    # full (B,N,N) HBM round trip); self-at-rank-0 assumption matches torch.
    _, idx = jax.lax.top_k(pd, k + 1)
    idx = idx[:, :, 1:]                                        # (B, N, k)

    proj_params, tail_params, c1_p, cout_p, cin_p, c_out = prepare_params(
        layer_params, sc_params, Cin, k)

    # Channels-last, lane-padded, bf16 MXU operands.
    feat_t = jnp.transpose(features, (0, 2, 1)).astype(jnp.float32)
    feat_p = _pad_last(feat_t, cin_p).astype(jnp.bfloat16)     # (B, N, Cin_p)

    pc, pdj, sc = project(feat_p, proj_params, c1_p, cout_p, row_tile)

    # Gather the already-projected neighbor rows, K-major: (B, K, N, C1p).
    # TODO(synk): move this row gather into the MLP kernel (scalar-prefetched
    # idx + in-VMEM / DMA gather) to avoid the (B,K,N,C1p) HBM round trip.
    idx_kn = jnp.transpose(idx, (0, 2, 1))                     # (B, K, N)
    pd_gathered = jax.vmap(lambda p_, i_: p_[i_])(pdj, idx_kn)  # (B, K, N, C1p)

    out_p = edgeconv_mlp(pc, pd_gathered, sc, tail_params, row_tile)
    out_t = out_p[:, :, :c_out]
    return jnp.transpose(out_t, (0, 2, 1))                     # (B, Cout, N)


# ---------------------------------------------------------------------------
# Parameter init (synthetic) + BN folding + pure-JAX f32 reference.
# ---------------------------------------------------------------------------
def fold_bn(gamma, beta, mean, var, eps=1e-5):
    scale = gamma / jnp.sqrt(var + eps)
    bias = beta - mean * scale
    return scale[None, :], bias[None, :]


def init_params(key, in_feat, out_feats):
    keys = jax.random.split(key, 8 * (len(out_feats) + 1))
    ki = iter(keys)
    layer_params = []
    c_prev = 2 * in_feat
    for c in out_feats:
        w = 0.2 * jax.random.normal(next(ki), (c_prev, c), jnp.float32)
        gamma = 0.5 + jax.random.uniform(next(ki), (c,), jnp.float32)
        beta = 0.1 * jax.random.normal(next(ki), (c,), jnp.float32)
        mean = 0.1 * jax.random.normal(next(ki), (c,), jnp.float32)
        var = 0.5 + jax.random.uniform(next(ki), (c,), jnp.float32)
        layer_params.append((w,) + fold_bn(gamma, beta, mean, var))
        c_prev = c
    c_out = out_feats[-1]
    wsc = 0.2 * jax.random.normal(next(ki), (in_feat, c_out), jnp.float32)
    gamma = 0.5 + jax.random.uniform(next(ki), (c_out,), jnp.float32)
    beta = 0.1 * jax.random.normal(next(ki), (c_out,), jnp.float32)
    mean = 0.1 * jax.random.normal(next(ki), (c_out,), jnp.float32)
    var = 0.5 + jax.random.uniform(next(ki), (c_out,), jnp.float32)
    sc_params = (wsc,) + fold_bn(gamma, beta, mean, var)
    return layer_params, sc_params


def reference(points, features, k, layer_params, sc_params):
    x = points.astype(jnp.float32)
    inner = jnp.einsum("bcn,bcm->bnm", x, x)
    xx = jnp.sum(x ** 2, axis=1)
    pd = 2.0 * inner - xx[:, :, None] - xx[:, None, :]
    _, idx = jax.lax.top_k(pd, k + 1)
    idx = idx[:, :, 1:]
    feat_t = jnp.transpose(features.astype(jnp.float32), (0, 2, 1))
    nbr = jax.vmap(lambda f, i: f[i])(feat_t, idx)                 # (B, N, K, C)
    center = jnp.broadcast_to(feat_t[:, :, None, :], nbr.shape)
    h = jnp.concatenate([center, nbr - center], axis=-1)           # (B, N, K, 2C)
    for w, s, b in layer_params:
        h = jnp.maximum(jnp.einsum("bnkc,cd->bnkd", h, w) * s + b, 0.0)
    y = jnp.mean(h, axis=2)
    wsc, ssc, bsc = sc_params
    sc = jnp.einsum("bnc,cd->bnd", feat_t, wsc) * ssc + bsc
    out_t = jnp.maximum(sc + y, 0.0)
    return jnp.transpose(out_t, (0, 2, 1))


if __name__ == "__main__":
    B, Cp, Cin, N = 2, 3, 4, 16
    k = 4
    out_feats = (32, 32, 32)

    key = jax.random.PRNGKey(0)
    k_pts, k_fts, k_par = jax.random.split(key, 3)
    points = jax.random.normal(k_pts, (B, Cp, N), jnp.float32)
    features = jax.random.normal(k_fts, (B, Cin, N), jnp.float32)
    layer_params, sc_params = init_params(k_par, Cin, out_feats)

    out = edge_conv_block(points, features, k, layer_params, sc_params)
    out = jax.block_until_ready(out)

    ref = jax.block_until_ready(
        reference(points, features, k, layer_params, sc_params))
    assert out.shape == (B, out_feats[-1], N)
    # bf16 MXU operands (f32 accumulate) -> compare against the f32 reference
    # with a bf16-appropriate tolerance.
    assert jnp.allclose(out, ref, atol=5e-2, rtol=5e-2), "mismatch vs reference"

    print("KERNEL_OK")
</pallas_src>

<mosaic_0001>
module attributes {stable_mosaic.version = 11 : i64} {
  func.func @_pairwise_dist_kernel(%arg0: i32, %arg1: i32, %arg2: memref<1x16x8xf32, #tpu.memory_space<vmem>>, %arg3: memref<1x8x16xf32, #tpu.memory_space<vmem>>, %arg4: memref<1x16x16xf32, #tpu.memory_space<vmem>>) attributes {dimension_semantics = [#tpu.dimension_semantics<parallel>, #tpu.dimension_semantics<parallel>], iteration_bounds = array<i64: 2, 1>, scalar_prefetch = 0 : i64, scratch_operands = 0 : i64, tpu.core_type = #tpu.core_type<tc>, window_params = [{transform_indices = @transform_0, window_bounds = array<i64: 1, 16, 8>}, {transform_indices = @transform_1, window_bounds = array<i64: 1, 8, 16>}, {transform_indices = @transform_2, window_bounds = array<i64: 1, 16, 16>}]} {
    %c0 = arith.constant 0 : index
    %c0_0 = arith.constant 0 : index
    %c0_1 = arith.constant 0 : index
    %0 = vector.load %arg2[%c0, %c0_0, %c0_1] : memref<1x16x8xf32, #tpu.memory_space<vmem>>, vector<1x16x8xf32>
    %1 = vector.shape_cast %0 : vector<1x16x8xf32> to vector<16x8xf32>
    %c0_2 = arith.constant 0 : index
    %c0_3 = arith.constant 0 : index
    %c0_4 = arith.constant 0 : index
    %2 = vector.load %arg3[%c0_2, %c0_3, %c0_4] : memref<1x8x16xf32, #tpu.memory_space<vmem>>, vector<1x8x16xf32>
    %3 = vector.shape_cast %2 : vector<1x8x16xf32> to vector<8x16xf32>
    %cst = arith.constant dense<0.000000e+00> : vector<16x16xf32>
    %4 = tpu.matmul %1, %3, %cst {dimension_numbers = #tpu.dot_dimension_numbers<[1], [0], [0], [1], [0, 0, 1, 1], [], []>} : vector<16x8xf32>, vector<8x16xf32>, vector<16x16xf32> -> vector<16x16xf32>
    %5 = arith.mulf %1, %1 : vector<16x8xf32>
    %cst_5 = arith.constant dense<0.000000e+00> : vector<16xf32>
    %6 = vector.multi_reduction <add>, %5, %cst_5 [1] : vector<16x8xf32> to vector<16xf32>
    %7 = vector.shape_cast %6 : vector<16xf32> to vector<16x1xf32>
    %8 = arith.mulf %3, %3 : vector<8x16xf32>
    %cst_6 = arith.constant dense<0.000000e+00> : vector<16xf32>
    %9 = vector.multi_reduction <add>, %8, %cst_6 [0] : vector<8x16xf32> to vector<16xf32>
    %10 = vector.shape_cast %9 : vector<16xf32> to vector<1x16xf32>
    %cst_7 = arith.constant 2.000000e+00 : f32
    %11 = vector.broadcast %cst_7 : f32 to vector<16x16xf32>
    %12 = arith.mulf %11, %4 : vector<16x16xf32>
    %13 = vector.broadcast %7 : vector<16x1xf32> to vector<16x16xf32>
    %14 = arith.subf %12, %13 : vector<16x16xf32>
    %15 = vector.broadcast %10 : vector<1x16xf32> to vector<16x16xf32>
    %16 = arith.subf %14, %15 : vector<16x16xf32>
    %c0_8 = arith.constant 0 : index
    %c0_9 = arith.constant 0 : index
    %c0_10 = arith.constant 0 : index
    %17 = vector.load %arg4[%c0_8, %c0_9, %c0_10] : memref<1x16x16xf32, #tpu.memory_space<vmem>>, vector<1x16x16xf32>
    %18 = vector.shape_cast %17 : vector<1x16x16xf32> to vector<16x16xf32>
    %19 = vector.shape_cast %16 : vector<16x16xf32> to vector<1x16x16xf32>
    tpu.vector_store %arg4[%c0_8, %c0_9, %c0_10], %19 {strides = array<i32>} : memref<1x16x16xf32, #tpu.memory_space<vmem>>, vector<1x16x16xf32>,
    return
  }
  func.func @transform_0(%arg0: i32, %arg1: i32) -> (i32, i32, i32) {
    %c0_i32 = arith.constant 0 : i32
    %c0_i32_0 = arith.constant 0 : i32
    return %arg0, %arg1, %c0_i32 : i32, i32, i32
  }
  func.func @transform_1(%arg0: i32, %arg1: i32) -> (i32, i32, i32) {
    %c0_i32 = arith.constant 0 : i32
    %c0_i32_0 = arith.constant 0 : i32
    %c0_i32_1 = arith.constant 0 : i32
    return %arg0, %c0_i32, %c0_i32_0 : i32, i32, i32
  }
  func.func @transform_2(%arg0: i32, %arg1: i32) -> (i32, i32, i32) {
    %c0_i32 = arith.constant 0 : i32
    %c0_i32_0 = arith.constant 0 : i32
    return %arg0, %arg1, %c0_i32 : i32, i32, i32
  }
}

</mosaic_0001>

<llo_original>
// kernel: tpu_custom_call.1
$region0: #{tpu_custom_call.1}
  #allocation0 [shape = 'u32[]', space=smem, size = 0x4, offset = 0x4, fixed_abs, tag = 'smem constant byte address 0x4 - core index']
  #allocation1 [shape = 'u32[144,128]{1,0:T(1,128)}', space=vmem, size = 0x12000, scoped, tag = 'internal scratch']
  %s0 = inlined_call_operand.vmem [shape: f32[2,16,8], index: 0, kind: input, shape index: {}]
  %s1 = inlined_call_operand.vmem [shape: f32[2,8,16], index: 1, kind: input, shape index: {}]
  %s2 = inlined_call_operand.hbm [shape: f32[2,16,16], index: 2, kind: output, shape index: {}]
  %s3 = sld [smem:[#allocation0]]
  $region41: #{tpu_custom_call.1} parent=0
    _
  %s5 = ssub.s32 1, %s3
  %s6 = scalar_select 0, %s5, %s3
  $region1: #{tpu_custom_call.1} parent=0
    #allocation2 [shape = 'u8[16384]{0}', space=vmem, size = 0x4000, scoped, tag = 'output window, operand 0']
    #allocation3 [shape = 's32[2]{0}', space=sflag, size = 0x8, scoped, tag = 'scoped memory for tpu_custom_call.1']
    %7 = vsyncpa [#allocation3], 0
    %s8 = scalar_lea.sflag [#allocation3], 1
    %9 = vsyncpa %s8, 0
    loop: start=0, step=1, limit=4
    $region2: #{tpu_custom_call.1} parent=1 // loop_pre_header
      _
    $region3: #{tpu_custom_call.1} parent=1 // loop_header
      %s11 = sphi 0, %s15
      %p12 = scmp.ge.s32.totalorder %s11, 4
      %s18 = sphi 0, %s30
      %s19 = sphi 0, %s26
      %s20 = sphi 0, %s18
      %s21 = sphi 0, %s19
      %s22 = sphi 0, %s20
      %s23 = sphi 0, %s21
      %s35 = sphi 0, %s37
      %s38 = sphi 0, %s35
      %s39 = sphi 0, %s38
      %s55 = sphi 0, %s39
      %s61 = sphi 0, %s63
      %s64 = sphi 0, %s61
      %s65 = sphi 0, %s64
      %s81 = sphi 0, %s65
      %s89 = sphi 0, %s91
      %s92 = sphi 0, %s89
      %s93 = sphi 0, %s92
      %s109 = sphi 0, %s93
    $region4: #{tpu_custom_call.1} parent=1 // loop_header_branch
      %14 = sbr.rel (%p12) target = $region8
    $region5: #{tpu_custom_call.1} parent=1 // loop_body
      %s16 = ssub.s32 %s11, 1
      %s17 = ssub.s32 %s11, 2
      %s24 = sadd.s32 1, %s19
      %p25 = scmp.ge.s32.totalorder %s24, 1
      %s26 = scalar_select %p25, 0, %s24
      %s27 = sadd.s32 1, %s18
      %s28 = scalar_select %p25, %s27, %s18
      %p29 = scmp.ge.s32.totalorder %s28, 2
      %s30 = scalar_select %p29, 0, %s28
      %s31 = ssub.s32 %s18, %s30
      %s32 = ssub.s32 %s19, %s26
      %s33 = sor.u32 %s31, %s32
      %p34 = scmp.eq.s32.totalorder %s33, 0
      %s36 = sadd.s32 %s35, 1
      %s37 = scalar_select %p34, %s35, %s36
      %p40 = pneg %p34
      %p41 = scmp.eq.s32.totalorder %s11, 1
      %p42 = por %p40, %p41
      %p43 = scmp.ne.s32.totalorder %s35, %s38
      %p44 = scmp.eq.s32.totalorder %s11, 0
      %p45 = por %p43, %p44
      %p46 = scmp.ne.s32.totalorder %s35, %s38
      %p47 = scmp.eq.s32.totalorder %s16, 1
      %p48 = por %p46, %p47
      %p49 = scmp.ne.s32.totalorder %s38, %s39
      %p50 = scmp.eq.s32.totalorder %s16, 0
      %p51 = por %p49, %p50
      %p52 = scmp.ne.s32.totalorder %s38, %s39
      %p53 = scmp.eq.s32.totalorder %s17, 1
      %p54 = por %p52, %p53
      %p56 = scmp.ne.s32.totalorder %s39, %s55
      %p57 = scmp.eq.s32.totalorder %s17, 0
      %p58 = por %p56, %p57
      %s59 = ssub.s32 %s18, %s30
      %p60 = scmp.eq.s32.totalorder %s59, 0
      %s62 = sadd.s32 %s61, 1
      %s63 = scalar_select %p60, %s61, %s62
      %p66 = pneg %p60
      %p67 = scmp.eq.s32.totalorder %s11, 1
      %p68 = por %p66, %p67
      %p69 = scmp.ne.s32.totalorder %s61, %s64
      %p70 = scmp.eq.s32.totalorder %s11, 0
      %p71 = por %p69, %p70
      %p72 = scmp.ne.s32.totalorder %s61, %s64
      %p73 = scmp.eq.s32.totalorder %s16, 1
      %p74 = por %p72, %p73
      %p75 = scmp.ne.s32.totalorder %s64, %s65
      %p76 = scmp.eq.s32.totalorder %s16, 0
      %p77 = por %p75, %p76
      %p78 = scmp.ne.s32.totalorder %s64, %s65
      %p79 = scmp.eq.s32.totalorder %s17, 1
      %p80 = por %p78, %p79
      %p82 = scmp.ne.s32.totalorder %s65, %s81
      %p83 = scmp.eq.s32.totalorder %s17, 0
      %p84 = por %p82, %p83
      %s85 = ssub.s32 %s18, %s30
      %s86 = ssub.s32 %s19, %s26
      %s87 = sor.u32 %s85, %s86
      %p88 = scmp.eq.s32.totalorder %s87, 0
      %s90 = sadd.s32 %s89, 1
      %s91 = scalar_select %p88, %s89, %s90
      %p94 = pneg %p88
      %p95 = scmp.eq.s32.totalorder %s11, 1
      %p96 = por %p94, %p95
      %p97 = scmp.ne.s32.totalorder %s89, %s92
      %p98 = scmp.eq.s32.totalorder %s11, 0
      %p99 = por %p97, %p98
      %p100 = scmp.ne.s32.totalorder %s89, %s92
      %p101 = scmp.eq.s32.totalorder %s16, 1
      %p102 = por %p100, %p101
      %p103 = scmp.ne.s32.totalorder %s92, %s93
      %p104 = scmp.eq.s32.totalorder %s16, 0
      %p105 = por %p103, %p104
      %p106 = scmp.ne.s32.totalorder %s92, %s93
      %p107 = scmp.eq.s32.totalorder %s17, 1
      %p108 = por %p106, %p107
      %p110 = scmp.ne.s32.totalorder %s93, %s109
      %p111 = scmp.eq.s32.totalorder %s17, 0
      %p112 = por %p110, %p111
      %p113 = scmp.le.s32.totalorder 1, %s11
      %p114 = scmp.lt.s32.totalorder %s11, 3
      %p115 = pnand %p113, %p114
      %p116 = pneg %p115
      // Predicated region
      $region9: #{tpu_custom_call.1} parent=5 // pred_check
        _
      $region10: #{tpu_custom_call.1} parent=5 // pred_check_branch
        %118 = sbr.rel (%p115) target = $region12
      $region11: #{tpu_custom_call.1} parent=5 // pred_region
        %s119 = ssub.s32 %s11, 1
      $region12: #{tpu_custom_call.1} parent=5 // pred_fallthru
        _
      %p120 = scmp.lt.s32.totalorder %s11, 2
      // Predicated region
      $region13: #{tpu_custom_call.1} parent=5 // pred_check
        %p121 = pneg %p120
      $region14: #{tpu_custom_call.1} parent=5 // pred_check_branch
        %123 = sbr.rel (%p121) target = $region16
      $region15: #{tpu_custom_call.1} parent=5 // pred_region
        // Predicated region
        $region17: #{tpu_custom_call.1} parent=15 // pred_check
          %p124 = pneg %p45
        $region18: #{tpu_custom_call.1} parent=15 // pred_check_branch
          %126 = sbr.rel (%p124) target = $region20
        $region19: #{tpu_custom_call.1} parent=15 // pred_region
          %s127 = smul.u32 2, %s19
          %p128 = scmp.lt.s32.totalorder %s18, 1
          %s129 = scalar_select %p128, %s18, 1
          %p130 = scmp.lt.s32.totalorder %s127, 1
          %s131 = scalar_select %p130, %s127, 1
          %s132 = smul.addr %s129, 2
          %s133 = sadd.s32 %s131, %s132
          %s134 = smul.addr %s133, 8
          %s135 = scalar_lea.vmem %s0, %s134
          %s136 = smul.u32 2, %s19
        $region20: #{tpu_custom_call.1} parent=15 // pred_fallthru
          _
        // Predicated region
        $region21: #{tpu_custom_call.1} parent=15 // pred_check
          %p137 = pneg %p71
        $region22: #{tpu_custom_call.1} parent=15 // pred_check_branch
          %139 = sbr.rel (%p137) target = $region24
        $region23: #{tpu_custom_call.1} parent=15 // pred_region
          %p140 = scmp.lt.s32.totalorder %s18, 1
          %s141 = scalar_select %p140, %s18, 1
          %s142 = smul.addr %s141, 8
          %s143 = scalar_lea.vmem %s1, %s142
        $region24: #{tpu_custom_call.1} parent=15 // pred_fallthru
          _
      $region16: #{tpu_custom_call.1} parent=5 // pred_fallthru
        _
      %p144 = scmp.le.s32.totalorder 1, %s11
      %p145 = scmp.lt.s32.totalorder %s11, 3
      %p146 = pnand %p144, %p145
      %p147 = pneg %p146
      // Predicated region
      $region25: #{tpu_custom_call.1} parent=5 // pred_check
        _
      $region26: #{tpu_custom_call.1} parent=5 // pred_check_branch
        %149 = sbr.rel (%p146) target = $region28
      $region27: #{tpu_custom_call.1} parent=5 // pred_region
        %s150 = ssub.s32 %s11, 1
        %s151 = smul.u32 2, %s21
        %p152 = scmp.lt.s32.totalorder %s20, 1
        %s153 = scalar_select %p152, %s20, 1
        %p154 = scmp.lt.s32.totalorder %s151, 1
        %s155 = scalar_select %p154, %s151, 1
        %s156 = smul.addr %s153, 2
        %s157 = sadd.s32 %s155, %s156
        %s158 = smul.addr %s157, 8
        %s159 = scalar_lea.vmem %s0, %s158
        %p160 = pneg %p51
        %p161 = pneg %p48
        %p162 = scmp.lt.s32.totalorder %s20, 1
        %s163 = scalar_select %p162, %s20, 1
        %s164 = smul.addr %s163, 8
        %s165 = scalar_lea.vmem %s1, %s164
        %p166 = pneg %p77
        %p167 = pneg %p74
        %p168 = pneg %p105
        %p169 = pneg %p102
        %s170 = sand.u32 %s92, 1
        %s171 = scalar_lea.sflag [#allocation3], %s170
        %s172 = sand.u32 %s92, 1
        %s173 = smul.addr %s172, 16
        %s174 = scalar_lea.vmem [#allocation2], %s173
        %s175 = smul.u32 2, %s21
        %p176 = scmp.lt.s32.totalorder %s20, 1
        %s177 = scalar_select %p176, %s20, 1
        %p178 = scmp.lt.s32.totalorder %s175, 1
        %s179 = scalar_select %p178, %s175, 1
        %s180 = smul.addr %s177, 2
        %s181 = sadd.s32 %s179, %s180
        %s182 = smul.addr %s181, 8
        %s183 = scalar_lea.vmem %s0, %s182
        %s184 = smul.u32 2, %s21
        %p185 = scmp.lt.s32.totalorder %s20, 1
        %s186 = scalar_select %p185, %s20, 1
        %s187 = smul.addr %s186, 8
        %s188 = scalar_lea.vmem %s1, %s187
        %s189 = smul.u32 2, %s21
        %v190 = vld [vmem:[%s183] sm:$0xff]
        %v191 = vld [vmem:[%s183 + $0x8] sm:$0xff]
        %v192 = vld [vmem:[%s188] sm:$0xff]
        %vm193 = vcmask 64512
        %v195 = vsel %vm193, %v190, 0
        %v198 = vsel %vm193, %v191, 0
        %200 = vmatprep.subr.mxu0 0.0
        %201 = vmatpush1.msra.mxu0 %v192
        %202 = vmatprep.subr.mxu0 0.0
        %203 = vmatpush1.msra.mxu0 0.0
        %204 = vmatprep.subr.mxu0 0.0
        %205 = vmatpush1.msra.mxu0 0.0
        %206 = vmatprep.subr.mxu0 0.0
        %207 = vmatpush1.msra.mxu0 0.0
        %208 = vmatprep.subr.mxu0 0.0
        %209 = vmatpush1.msra.mxu0 0.0
        %210 = vmatprep.subr.mxu0 0.0
        %211 = vmatpush1.msra.mxu0 0.0
        %212 = vmatprep.subr.mxu0 0.0
        %213 = vmatpush1.msra.mxu0 0.0
        %214 = vmatprep.subr.mxu0 0.0
        %215 = vmatpush1.msra.mxu0 0.0
        %216 = vmatprep.subr.mxu0 0.0
        %217 = vmatpush1.msra.mxu0 0.0
        %218 = vmatprep.subr.mxu0 0.0
        %219 = vmatpush1.msra.mxu0 0.0
        %220 = vmatprep.subr.mxu0 0.0
        %221 = vmatpush1.msra.mxu0 0.0
        %222 = vmatprep.subr.mxu0 0.0
        %223 = vmatpush1.msra.mxu0 0.0
        %224 = vmatprep.subr.mxu0 0.0
        %225 = vmatpush1.msra.mxu0 0.0
        %226 = vmatprep.subr.mxu0 0.0
        %227 = vmatpush1.msra.mxu0 0.0
        %228 = vmatprep.subr.mxu0 0.0
        %229 = vmatpush1.msra.mxu0 0.0
        %230 = vmatprep.subr.mxu0 0.0
        %231 = vmatpush1.msra.mxu0 0.0
        %232 = vmatprep.subr.mxu0 0.0
        %233 = vmatpush1.msra.mxu0 0.0
        %234 = vmatprep.subr.mxu0 0.0
        %235 = vmatpush1.msra.mxu0 0.0
        %236 = vmatprep.subr.mxu0 0.0
        %237 = vmatpush1.msra.mxu0 0.0
        %238 = vmatprep.subr.mxu0 0.0
        %239 = vmatpush1.msra.mxu0 0.0
        %240 = vmatprep.subr.mxu0 0.0
        %241 = vmatpush1.msra.mxu0 0.0
        %242 = vmatprep.subr.mxu0 0.0
        %243 = vmatpush1.msra.mxu0 0.0
        %244 = vmatprep.subr.mxu0 0.0
        %245 = vmatpush1.msra.mxu0 0.0
        %246 = vmatprep.subr.mxu0 0.0
        %247 = vmatpush1.msra.mxu0 0.0
        %248 = vmatprep.subr.mxu0 0.0
        %249 = vmatpush1.msra.mxu0 0.0
        %250 = vmatprep.subr.mxu0 0.0
        %251 = vmatpush1.msra.mxu0 0.0
        %252 = vmatprep.subr.mxu0 0.0
        %253 = vmatpush1.msra.mxu0 0.0
        %254 = vmatprep.subr.mxu0 0.0
        %255 = vmatpush1.msra.mxu0 0.0
        %256 = vmatprep.subr.mxu0 0.0
        %257 = vmatpush1.msra.mxu0 0.0
        %258 = vmatprep.subr.mxu0 0.0
        %259 = vmatpush1.msra.mxu0 0.0
        %260 = vmatprep.subr.mxu0 0.0
        %261 = vmatpush1.msra.mxu0 0.0
        %262 = vmatprep.subr.mxu0 0.0
        %263 = vmatpush1.msra.mxu0 0.0
        %264 = vmatprep.mubr.f32.mxu0 0.0
        %265 = vmatmul.mubr.f32.gmra.mrb[0].mxu0 %v195
        %v266 = vpop.f32.mrb[0].mxu0
        %v267 = vadd.f32 0.0, %v266
        %v268 = vpop.f32.mrb[0].mxu0
        %269 = vmatprep.mubr.f32.mxu0 0.0
        %270 = vmatmul.mubr.f32.gmra.mrb[0].mxu0 %v198
        %v271 = vpop.f32.mrb[0].mxu0
        %v272 = vadd.f32 0.0, %v271
        %v273 = vpop.f32.mrb[0].mxu0
        %274 = vdwg.mxu0
        %v275 = vmul.f32 %v190, %v190
        %v276 = vmul.f32 %v191, %v191
        %v277 = vsel %vm193, %v275, 0.0
        %278 = vadd.xlane.f32.xlu0 %v277
        %v279 = vpop.xlane.xlu0 %278
        %v280 = vsel %vm193, %v276, 0.0
        %281 = vadd.xlane.f32.xlu0 %v280
        %v282 = vpop.xlane.xlu0 %281
        %v283 = vmul.f32 %v192, %v192
        %vm284 = vcmask 130048
        %v285 = vsel %vm284, %v283, 0.0
        %v286 = vrot.slane %v285, 4
        %v287 = vadd.f32 %v285, %v286
        %v288 = vrot.slane %v287, 2
        %v289 = vadd.f32 %v287, %v288
        %v290 = vrot.slane %v289, 1
        %v291 = vadd.f32 %v289, %v290
        %v292 = vmul.f32 %v267, 2.0
        %v293 = vmul.f32 %v272, 2.0
        %v294 = vsub.f32 %v292, %v279
        %v295 = vsub.f32 %v293, %v282
        %v296 = vsub.f32 %v294, %v291
        %v297 = vsub.f32 %v295, %v291
        %298 = vst.msk [vmem:[%s174] sm:$0xff] %vm284, %v296
        %299 = vst.msk [vmem:[%s174 + $0x8] sm:$0xff] %vm284, %v297
        %s300 = sand.u32 %s92, 1
        %s301 = scalar_lea.sflag [#allocation3], %s300
        %s302 = sand.u32 %s92, 1
        %s303 = smul.addr %s302, 16
        %s304 = scalar_lea.vmem [#allocation2], %s303
        // Predicated region
        $region29: #{tpu_custom_call.1} parent=27 // pred_check
          %p305 = pneg %p102
        $region30: #{tpu_custom_call.1} parent=27 // pred_check_branch
          %307 = sbr.rel (%p305) target = $region32
        $region31: #{tpu_custom_call.1} parent=27 // pred_region
          %s308 = smul.u32 2, %s21
          %s310 = ssub.s32 256, 256
          %311 = vsyncadd %s301, %s310
          %s312 = smul.addr %s20, 2
          %s313 = sadd.s32 %s308, %s312
          %s314 = smul.addr %s313, 128
          %s315 = scalar_lea.hbm %s2, %s314
          %s316 = sshll.u32 %s304, 4
          %s317 = int_to_ptr.vmem [resolvable:$true] %s316
          %322 = dma.vmem_to_hbm [thread:$0]  %s317, 256, %s315, %s301, 128, 128, 8
        $region32: #{tpu_custom_call.1} parent=27 // pred_fallthru
          _
      $region28: #{tpu_custom_call.1} parent=5 // pred_fallthru
        _
      %p323 = scmp.le.s32.totalorder 2, %s11
      // Predicated region
      $region33: #{tpu_custom_call.1} parent=5 // pred_check
        %p324 = pneg %p323
      $region34: #{tpu_custom_call.1} parent=5 // pred_check_branch
        %326 = sbr.rel (%p324) target = $region36
      $region35: #{tpu_custom_call.1} parent=5 // pred_region
        %s327 = ssub.s32 %s11, 2
        // Predicated region
        $region37: #{tpu_custom_call.1} parent=35 // pred_check
          %p328 = pneg %p108
        $region38: #{tpu_custom_call.1} parent=35 // pred_check_branch
          %330 = sbr.rel (%p328) target = $region40
        $region39: #{tpu_custom_call.1} parent=35 // pred_region
          %s331 = sand.u32 %s93, 1
          %s332 = scalar_lea.sflag [#allocation3], %s331
          %s333 = sand.u32 %s93, 1
          %s334 = smul.addr %s333, 16
          %s335 = scalar_lea.vmem [#allocation2], %s334
          %336 = dma.done %s332, 256
        $region40: #{tpu_custom_call.1} parent=35 // pred_fallthru
          _
      $region36: #{tpu_custom_call.1} parent=5 // pred_fallthru
        _
    $region6: #{tpu_custom_call.1} parent=1 // loop_footer
      %s15 = sadd.s32 1, %s11
    $region7: #{tpu_custom_call.1} parent=1 // loop_footer_branch
      %10 = sbr.rel target = $region3
    $region8: #{tpu_custom_call.1} parent=1 // loop_exit
      _
    %337 = vsyncpa [#allocation3], 1
    %s338 = scalar_lea.sflag [#allocation3], 1
    %339 = vsyncpa %s338, 1

</llo_original>
